<compile_context>
chip_gen: v6e
topology: v6e:2x2x1
jax: 0.10.0
libtpu: 0.0.40
codegen_flags: <defaults>
</compile_context>

<pallas_src>
import functools

import jax
import jax.numpy as jnp
from jax.experimental import pallas as pl
from jax.experimental.pallas import tpu as pltpu

INT32_MAX_F32 = jnp.float32(2147483647)  # torch.Tensor(int32 array) -> float32
_LANE = 128
_SUBLANE = 8
_MAX_BLOCK_ROWS = 1024                   # 9 MiB double-buffered: fits v5e/v6e/v7x


def _round_up(x, m):
    return -(-x // m) * m


def _kernel_rows(input_width, input_height):
    """Row count of the lane-dense (rows, 128) kernel layout."""
    p = input_width * input_height
    return _round_up(-(-p // _LANE), _SUBLANE)


def _pick_block_rows(rows, cap=_MAX_BLOCK_ROWS):
    """Largest divisor of `rows` (multiple of 8) <= cap, preferring an even
    grid of >= 4 steps so both v7x TensorCores stay busy."""
    divisors = [d for d in range(_SUBLANE, rows + 1, _SUBLANE) if rows % d == 0]
    best = None
    for d in divisors:                       # ascending: last hit is largest
        g = rows // d
        if d <= cap and g >= 4 and g % 2 == 0:
            best = d
    if best is not None:
        return best
    fits = [d for d in divisors if d <= cap]
    return fits[-1] if fits else _SUBLANE


# ----------------------------------------------------------------------------
# Layout helpers (one-time, at module init / for inspection only).
# ----------------------------------------------------------------------------
def init_time_maps(input_width, input_height):
    """Fresh time maps (INT32_MAX sentinel) already in the kernel layout."""
    rows = _kernel_rows(input_width, input_height)
    m = jnp.full((rows, _LANE), INT32_MAX_F32, dtype=jnp.float32)
    return m, m


def pack_time_map(m_wh, input_width, input_height):
    """(W, H) map -> kernel-layout (rows, 128) map (padding = sentinel)."""
    rows = _kernel_rows(input_width, input_height)
    p = input_width * input_height
    flat = m_wh.astype(jnp.float32).reshape(-1)
    flat = jnp.pad(flat, (0, rows * _LANE - p), constant_values=INT32_MAX_F32)
    return flat.reshape(rows, _LANE)


def unpack_time_map(m_packed, input_width, input_height):
    """Kernel-layout map -> (W, H) view (for inspection; not needed per step)."""
    p = input_width * input_height
    return m_packed.reshape(-1)[:p].reshape(input_width, input_height)


# ----------------------------------------------------------------------------
# Pallas kernel: pure elementwise (VPU selects + EUP exp) over a lane-dense
# tile of the flattened maps.  The event scatter has already been reduced to
# a per-pixel "event time or -inf" plane pair in the wrapper.
# ----------------------------------------------------------------------------
def _time_surf_kernel(scal_ref, evt_ref, map_pos_ref, map_neg_ref,
                      surf_ref, new_pos_ref, new_neg_ref, *, neg_decay):
    cur_time = scal_ref[0]

    mp = map_pos_ref[...]
    mn = map_neg_ref[...]
    ep = evt_ref[0, :, :]
    en = evt_ref[1, :, :]

    # map[map >= 0] += cur_time (float32 semantics; sentinel stays huge).
    mp = jnp.where(mp >= 0, mp + cur_time, mp)
    mn = jnp.where(mn >= 0, mn + cur_time, mn)

    # Event overwrite (after the += pass, as in the reference module).
    # -inf marks "no event at this pixel".
    mp = jnp.where(ep > -jnp.inf, ep, mp)
    mn = jnp.where(en > -jnp.inf, en, mn)

    ch_pos = jnp.exp(jnp.float32(neg_decay) * mp)
    ch_neg = jnp.exp(jnp.float32(neg_decay) * mn)

    green = jnp.where((ch_pos != 0) | (ch_neg != 0),
                      jnp.float32(0.0), jnp.float32(1.0))
    red = jnp.where(ch_pos == 0, jnp.float32(109.0 / 255.0), ch_pos)
    blue = jnp.where(ch_neg == 0, jnp.float32(106.0 / 255.0), ch_neg)

    surf_ref[0, :, :] = red
    surf_ref[1, :, :] = green
    surf_ref[2, :, :] = blue
    new_pos_ref[...] = mp
    new_neg_ref[...] = mn


# ----------------------------------------------------------------------------
# Wrapper: spike decoding + single fused O(N) scatter-max in plain JAX,
# lane-dense tiled elementwise hot path in Pallas.  `time_map_pos` /
# `time_map_neg` are expected (and returned) in the kernel layout produced by
# `init_time_maps` / `pack_time_map`.
# ----------------------------------------------------------------------------
def time_surf_forward(spikes, yes_no, time_map_pos, time_map_neg,
                      *, input_width, input_height, decay_constant,
                      channel_last=False):
    W, H = input_width, input_height
    A, B, C = spikes.shape
    assert C == W + H + 1
    N = A * B

    rows = _kernel_rows(W, H)
    P = W * H
    P_pad = rows * _LANE
    assert time_map_pos.shape == (rows, _LANE)
    assert time_map_neg.shape == (rows, _LANE)

    # Static-shape replacement for the original boolean-indexing filters.
    yn = yes_no.reshape(-1) != 0

    # Cumulative timestamps from per-event time deltas (last channel).
    dts = spikes[..., -1].reshape(-1)
    times = jnp.cumsum(dts).astype(jnp.float32)
    cur_time = times[-1]

    # Decode one-hot spike coordinates; polarity is the value at the x slot.
    x_part = spikes[..., :W].reshape(N, W)
    y_part = spikes[..., W:W + H].reshape(N, H)
    x_idx = jnp.argmax(x_part != 0, axis=-1).astype(jnp.int32)
    y_idx = jnp.argmax(y_part != 0, axis=-1).astype(jnp.int32)
    pol = jnp.take_along_axis(x_part, x_idx[:, None], axis=-1)[:, 0]

    is_pos = yn & (pol == 1)
    is_neg = yn & (pol == -1)

    # Single fused O(N) scatter of event times into a (2, P_pad) buffer
    # (plane 0 = positive polarity, plane 1 = negative).  Scatter-max equals
    # last-write-wins because times are monotone; invalid events carry -inf
    # (no-op under max).
    neg_inf = jnp.float32(-jnp.inf)
    flat_idx = x_idx * H + y_idx
    pol_bit = is_neg.astype(jnp.int32)
    vals = jnp.where(is_pos | is_neg, times, neg_inf)
    evt = (jnp.full((2 * P_pad,), neg_inf, jnp.float32)
           .at[pol_bit * P_pad + flat_idx].max(vals)
           .reshape(2, rows, _LANE))

    scal = cur_time.reshape(1).astype(jnp.float32)

    block_rows = _pick_block_rows(rows)          # divides rows: no row padding
    grid = (rows // block_rows,)

    tile = pl.BlockSpec((block_rows, _LANE), lambda i: (i, 0))
    evt_tile = pl.BlockSpec((2, block_rows, _LANE), lambda i: (0, i, 0))
    surf_tile = pl.BlockSpec((3, block_rows, _LANE), lambda i: (0, i, 0))
    smem = pl.BlockSpec(memory_space=pltpu.MemorySpace.SMEM)

    kernel = functools.partial(_time_surf_kernel,
                               neg_decay=-float(decay_constant))

    surf_flat, new_pos, new_neg = pl.pallas_call(
        kernel,
        out_shape=(
            jax.ShapeDtypeStruct((3, rows, _LANE), jnp.float32),
            jax.ShapeDtypeStruct((rows, _LANE), jnp.float32),
            jax.ShapeDtypeStruct((rows, _LANE), jnp.float32),
        ),
        grid=grid,
        in_specs=[smem, evt_tile, tile, tile],
        out_specs=(surf_tile, tile, tile),
        # Operands: (scal, evt, map_pos, map_neg) -> outputs (surf, pos, neg).
        # In-place map update, matching the PyTorch module's buffer mutation.
        input_output_aliases={2: 1, 3: 2},
        compiler_params=pltpu.CompilerParams(
            dimension_semantics=("parallel",)),
    )(scal, evt, time_map_pos, time_map_neg)

    # Surface output: slice off lane padding (a free reshape when P_pad == P).
    surf_cwh = surf_flat.reshape(3, -1)[:, :P].reshape(3, W, H)

    if channel_last:
        # Matches PyTorch's time_surface[x, y, channel] convention.  This is
        # a lane-sparse (minor-dim 3) relayout; keep it off the hot path.
        time_surface = jnp.transpose(surf_cwh, (1, 2, 0))
    else:
        time_surface = surf_cwh
    # The maps are returned in the kernel layout; carry them to the next call
    # as-is (use unpack_time_map only when a (W, H) view is actually needed).
    return time_surface, new_pos, new_neg


# ----------------------------------------------------------------------------
# Pure-JAX reference (same math, (W, H) layout, no Pallas) for correctness.
# ----------------------------------------------------------------------------
def _reference_forward(spikes, yes_no, time_map_pos, time_map_neg,
                       *, input_width, input_height, decay_constant):
    W, H = input_width, input_height
    A, B, C = spikes.shape
    N = A * B
    yn = yes_no.reshape(-1) != 0
    dts = spikes[..., -1].reshape(-1)
    times = jnp.cumsum(dts).astype(jnp.float32)
    cur_time = times[-1]
    x_part = spikes[..., :W].reshape(N, W)
    y_part = spikes[..., W:W + H].reshape(N, H)
    x_idx = jnp.argmax(x_part != 0, axis=-1).astype(jnp.int32)
    y_idx = jnp.argmax(y_part != 0, axis=-1).astype(jnp.int32)
    pol = jnp.take_along_axis(x_part, x_idx[:, None], axis=-1)[:, 0]
    is_pos = yn & (pol == 1)
    is_neg = yn & (pol == -1)
    neg_inf = jnp.float32(-jnp.inf)
    flat_idx = x_idx * H + y_idx

    def upd(m, valid):
        m = m.astype(jnp.float32)
        m = jnp.where(m >= 0, m + cur_time, m)
        evt = (jnp.full((W * H,), neg_inf, jnp.float32)
               .at[flat_idx].max(jnp.where(valid, times, neg_inf))
               .reshape(W, H))
        return jnp.where(evt > -jnp.inf, evt, m)

    mp = upd(time_map_pos, is_pos)
    mn = upd(time_map_neg, is_neg)
    ch_pos = jnp.exp(jnp.float32(-decay_constant) * mp)
    ch_neg = jnp.exp(jnp.float32(-decay_constant) * mn)
    green = jnp.where((ch_pos != 0) | (ch_neg != 0),
                      jnp.float32(0.0), jnp.float32(1.0))
    red = jnp.where(ch_pos == 0, jnp.float32(109.0 / 255.0), ch_pos)
    blue = jnp.where(ch_neg == 0, jnp.float32(106.0 / 255.0), ch_neg)
    surf = jnp.stack([red, green, blue], axis=0).astype(jnp.float32)  # (3,W,H)
    return surf, mp, mn


if __name__ == "__main__":
    # Small deterministic setup consistent with the module:
    #   input_width = input_height = 16, spikes: (2, 8, W+H+1), yes_no: (2, 8)
    W = 16
    H = 16
    A, B = 2, 8
    decay_constant = 0.05

    key = jax.random.PRNGKey(0)
    k1, k2, k3, k4, k5 = jax.random.split(key, 5)
    xs = jax.random.randint(k1, (A, B), 0, W)
    ys = jax.random.randint(k2, (A, B), 0, H)
    pols = jnp.where(jax.random.bernoulli(k3, 0.5, (A, B)),
                     jnp.float32(1.0), jnp.float32(-1.0))
    dts = jax.random.uniform(k4, (A, B), minval=0.1, maxval=2.0,
                             dtype=jnp.float32)
    yes_no = jax.random.bernoulli(k5, 0.7, (A, B)).astype(jnp.float32)

    # Spike encoding: x one-hot carries polarity, y one-hot is 1, last
    # channel is the time delta.
    x_onehot = jax.nn.one_hot(xs, W, dtype=jnp.float32) * pols[..., None]
    y_onehot = jax.nn.one_hot(ys, H, dtype=jnp.float32)
    spikes = jnp.concatenate([x_onehot, y_onehot, dts[..., None]], axis=-1)

    # __init__ buffers: maps full of int32 max, carried in the kernel layout.
    mp_packed, mn_packed = init_time_maps(W, H)
    mp_wh = jnp.full((W, H), INT32_MAX_F32, dtype=jnp.float32)
    mn_wh = jnp.full((W, H), INT32_MAX_F32, dtype=jnp.float32)

    fwd = functools.partial(time_surf_forward,
                            input_width=W, input_height=H,
                            decay_constant=decay_constant)
    ref = functools.partial(_reference_forward,
                            input_width=W, input_height=H,
                            decay_constant=decay_constant)

    # First forward: fresh (all-sentinel) maps.
    surf1, mp_packed, mn_packed = fwd(spikes, yes_no, mp_packed, mn_packed)
    jax.block_until_ready((surf1, mp_packed, mn_packed))
    r_surf1, r_mp, r_mn = ref(spikes, yes_no, mp_wh, mn_wh)

    assert surf1.shape == (3, W, H)
    assert surf1.dtype == jnp.float32
    assert jnp.allclose(surf1, r_surf1, rtol=1e-5, atol=1e-5)
    assert jnp.allclose(unpack_time_map(mp_packed, W, H), r_mp,
                        rtol=1e-6, atol=1e-4)
    assert jnp.allclose(unpack_time_map(mn_packed, W, H), r_mn,
                        rtol=1e-6, atol=1e-4)

    # Second forward with the carried (kernel-layout) maps: exercises the
    # "+= cur_time on real timestamps" path and the aliased in-place update.
    surf2, mp_packed, mn_packed = fwd(spikes, yes_no, mp_packed, mn_packed)
    jax.block_until_ready((surf2, mp_packed, mn_packed))
    r_surf2, r_mp2, r_mn2 = ref(spikes, yes_no, r_mp, r_mn)

    assert jnp.allclose(surf2, r_surf2, rtol=1e-5, atol=1e-5)
    assert jnp.allclose(unpack_time_map(mp_packed, W, H), r_mp2,
                        rtol=1e-6, atol=1e-4)
    assert jnp.allclose(unpack_time_map(mn_packed, W, H), r_mn2,
                        rtol=1e-6, atol=1e-4)

    # Optional channel-last output (PyTorch (W, H, 3) convention) still works.
    surf_last, _, _ = fwd(spikes, yes_no, mp_packed, mn_packed,
                          channel_last=True)
    jax.block_until_ready(surf_last)
    assert surf_last.shape == (W, H, 3)

    print("KERNEL_OK")
</pallas_src>

<mosaic_0001>
module attributes {stable_mosaic.version = 11 : i64} {
  func.func @_time_surf_kernel(%arg0: i32, %arg1: memref<1xf32, #tpu.memory_space<smem>>, %arg2: memref<2x8x128xf32, #tpu.memory_space<vmem>>, %arg3: memref<8x128xf32, #tpu.memory_space<vmem>>, %arg4: memref<8x128xf32, #tpu.memory_space<vmem>>, %arg5: memref<3x8x128xf32, #tpu.memory_space<vmem>>, %arg6: memref<8x128xf32, #tpu.memory_space<vmem>>, %arg7: memref<8x128xf32, #tpu.memory_space<vmem>>) attributes {dimension_semantics = [#tpu.dimension_semantics<parallel>], iteration_bounds = array<i64: 1>, scalar_prefetch = 0 : i64, scratch_operands = 0 : i64, tpu.core_type = #tpu.core_type<tc>, window_params = [{transform_indices = @transform_0, window_bounds = array<i64: 1>}, {transform_indices = @transform_1, window_bounds = array<i64: 2, 8, 128>}, {transform_indices = @transform_2, window_bounds = array<i64: 8, 128>}, {transform_indices = @transform_3, window_bounds = array<i64: 8, 128>}, {transform_indices = @transform_4, window_bounds = array<i64: 3, 8, 128>}, {transform_indices = @transform_5, window_bounds = array<i64: 8, 128>}, {transform_indices = @transform_6, window_bounds = array<i64: 8, 128>}]} {
    %c0 = arith.constant 0 : index
    %0 = memref.load %arg1[%c0] : memref<1xf32, #tpu.memory_space<smem>>
    %c0_0 = arith.constant 0 : index
    %c0_1 = arith.constant 0 : index
    %1 = vector.load %arg3[%c0_0, %c0_1] : memref<8x128xf32, #tpu.memory_space<vmem>>, vector<8x128xf32>
    %c0_2 = arith.constant 0 : index
    %c0_3 = arith.constant 0 : index
    %2 = vector.load %arg4[%c0_2, %c0_3] : memref<8x128xf32, #tpu.memory_space<vmem>>, vector<8x128xf32>
    %c0_4 = arith.constant 0 : index
    %c0_5 = arith.constant 0 : index
    %c0_6 = arith.constant 0 : index
    %3 = vector.load %arg2[%c0_4, %c0_5, %c0_6] : memref<2x8x128xf32, #tpu.memory_space<vmem>>, vector<1x8x128xf32>
    %4 = vector.shape_cast %3 : vector<1x8x128xf32> to vector<8x128xf32>
    %c1 = arith.constant 1 : index
    %c0_7 = arith.constant 0 : index
    %c0_8 = arith.constant 0 : index
    %5 = vector.load %arg2[%c1, %c0_7, %c0_8] : memref<2x8x128xf32, #tpu.memory_space<vmem>>, vector<1x8x128xf32>
    %6 = vector.shape_cast %5 : vector<1x8x128xf32> to vector<8x128xf32>
    %cst = arith.constant 0.000000e+00 : f32
    %7 = vector.broadcast %cst : f32 to vector<8x128xf32>
    %8 = arith.cmpf oge, %1, %7 : vector<8x128xf32>
    %9 = vector.broadcast %0 : f32 to vector<8x128xf32>
    %10 = arith.addf %1, %9 : vector<8x128xf32>
    %11 = arith.select %8, %10, %1 : vector<8x128xi1>, vector<8x128xf32>
    %cst_9 = arith.constant 0.000000e+00 : f32
    %12 = vector.broadcast %cst_9 : f32 to vector<8x128xf32>
    %13 = arith.cmpf oge, %2, %12 : vector<8x128xf32>
    %14 = vector.broadcast %0 : f32 to vector<8x128xf32>
    %15 = arith.addf %2, %14 : vector<8x128xf32>
    %16 = arith.select %13, %15, %2 : vector<8x128xi1>, vector<8x128xf32>
    %cst_10 = arith.constant 0xFF800000 : f32
    %17 = vector.broadcast %cst_10 : f32 to vector<8x128xf32>
    %18 = arith.cmpf ogt, %4, %17 : vector<8x128xf32>
    %19 = arith.select %18, %4, %11 : vector<8x128xi1>, vector<8x128xf32>
    %cst_11 = arith.constant 0xFF800000 : f32
    %20 = vector.broadcast %cst_11 : f32 to vector<8x128xf32>
    %21 = arith.cmpf ogt, %6, %20 : vector<8x128xf32>
    %22 = arith.select %21, %6, %16 : vector<8x128xi1>, vector<8x128xf32>
    %cst_12 = arith.constant -5.000000e-02 : f32
    %23 = vector.broadcast %cst_12 : f32 to vector<8x128xf32>
    %24 = arith.mulf %23, %19 : vector<8x128xf32>
    %25 = math.exp %24 : vector<8x128xf32>
    %cst_13 = arith.constant -5.000000e-02 : f32
    %26 = vector.broadcast %cst_13 : f32 to vector<8x128xf32>
    %27 = arith.mulf %26, %22 : vector<8x128xf32>
    %28 = math.exp %27 : vector<8x128xf32>
    %cst_14 = arith.constant 0.000000e+00 : f32
    %29 = vector.broadcast %cst_14 : f32 to vector<8x128xf32>
    %30 = arith.cmpf one, %25, %29 : vector<8x128xf32>
    %cst_15 = arith.constant 0.000000e+00 : f32
    %31 = vector.broadcast %cst_15 : f32 to vector<8x128xf32>
    %32 = arith.cmpf one, %28, %31 : vector<8x128xf32>
    %33 = arith.ori %30, %32 : vector<8x128xi1>
    %cst_16 = arith.constant 0.000000e+00 : f32
    %cst_17 = arith.constant 1.000000e+00 : f32
    %34 = vector.broadcast %cst_16 : f32 to vector<8x128xf32>
    %35 = vector.broadcast %cst_17 : f32 to vector<8x128xf32>
    %36 = arith.select %33, %34, %35 : vector<8x128xi1>, vector<8x128xf32>
    %cst_18 = arith.constant 0.000000e+00 : f32
    %37 = vector.broadcast %cst_18 : f32 to vector<8x128xf32>
    %38 = arith.cmpf oeq, %25, %37 : vector<8x128xf32>
    %cst_19 = arith.constant 0.427450985 : f32
    %39 = vector.broadcast %cst_19 : f32 to vector<8x128xf32>
    %40 = arith.select %38, %39, %25 : vector<8x128xi1>, vector<8x128xf32>
    %cst_20 = arith.constant 0.000000e+00 : f32
    %41 = vector.broadcast %cst_20 : f32 to vector<8x128xf32>
    %42 = arith.cmpf oeq, %28, %41 : vector<8x128xf32>
    %cst_21 = arith.constant 0.41568628 : f32
    %43 = vector.broadcast %cst_21 : f32 to vector<8x128xf32>
    %44 = arith.select %42, %43, %28 : vector<8x128xi1>, vector<8x128xf32>
    %c0_22 = arith.constant 0 : index
    %c0_23 = arith.constant 0 : index
    %c0_24 = arith.constant 0 : index
    %45 = vector.load %arg5[%c0_22, %c0_23, %c0_24] : memref<3x8x128xf32, #tpu.memory_space<vmem>>, vector<1x8x128xf32>
    %46 = vector.shape_cast %45 : vector<1x8x128xf32> to vector<8x128xf32>
    %47 = vector.shape_cast %40 : vector<8x128xf32> to vector<1x8x128xf32>
    tpu.vector_store %arg5[%c0_22, %c0_23, %c0_24], %47 {strides = array<i32>} : memref<3x8x128xf32, #tpu.memory_space<vmem>>, vector<1x8x128xf32>,
    %c1_25 = arith.constant 1 : index
    %c0_26 = arith.constant 0 : index
    %c0_27 = arith.constant 0 : index
    %48 = vector.load %arg5[%c1_25, %c0_26, %c0_27] : memref<3x8x128xf32, #tpu.memory_space<vmem>>, vector<1x8x128xf32>
    %49 = vector.shape_cast %48 : vector<1x8x128xf32> to vector<8x128xf32>
    %50 = vector.shape_cast %36 : vector<8x128xf32> to vector<1x8x128xf32>
    tpu.vector_store %arg5[%c1_25, %c0_26, %c0_27], %50 {strides = array<i32>} : memref<3x8x128xf32, #tpu.memory_space<vmem>>, vector<1x8x128xf32>,
    %c2 = arith.constant 2 : index
    %c0_28 = arith.constant 0 : index
    %c0_29 = arith.constant 0 : index
    %51 = vector.load %arg5[%c2, %c0_28, %c0_29] : memref<3x8x128xf32, #tpu.memory_space<vmem>>, vector<1x8x128xf32>
    %52 = vector.shape_cast %51 : vector<1x8x128xf32> to vector<8x128xf32>
    %53 = vector.shape_cast %44 : vector<8x128xf32> to vector<1x8x128xf32>
    tpu.vector_store %arg5[%c2, %c0_28, %c0_29], %53 {strides = array<i32>} : memref<3x8x128xf32, #tpu.memory_space<vmem>>, vector<1x8x128xf32>,
    %c0_30 = arith.constant 0 : index
    %c0_31 = arith.constant 0 : index
    %54 = vector.load %arg6[%c0_30, %c0_31] : memref<8x128xf32, #tpu.memory_space<vmem>>, vector<8x128xf32>
    tpu.vector_store %arg6[%c0_30, %c0_31], %19 {strides = array<i32>} : memref<8x128xf32, #tpu.memory_space<vmem>>, vector<8x128xf32>,
    %c0_32 = arith.constant 0 : index
    %c0_33 = arith.constant 0 : index
    %55 = vector.load %arg7[%c0_32, %c0_33] : memref<8x128xf32, #tpu.memory_space<vmem>>, vector<8x128xf32>
    tpu.vector_store %arg7[%c0_32, %c0_33], %22 {strides = array<i32>} : memref<8x128xf32, #tpu.memory_space<vmem>>, vector<8x128xf32>,
    return
  }
  func.func @transform_0(%arg0: i32) -> i32 {
    %c0_i32 = arith.constant 0 : i32
    %c0_i32_0 = arith.constant 0 : i32
    return %c0_i32 : i32
  }
  func.func @transform_1(%arg0: i32) -> (i32, i32, i32) {
    %c0_i32 = arith.constant 0 : i32
    %c0_i32_0 = arith.constant 0 : i32
    %c0_i32_1 = arith.constant 0 : i32
    return %c0_i32, %arg0, %c0_i32_0 : i32, i32, i32
  }
  func.func @transform_2(%arg0: i32) -> (i32, i32) {
    %c0_i32 = arith.constant 0 : i32
    %c0_i32_0 = arith.constant 0 : i32
    return %arg0, %c0_i32 : i32, i32
  }
  func.func @transform_3(%arg0: i32) -> (i32, i32) {
    %c0_i32 = arith.constant 0 : i32
    %c0_i32_0 = arith.constant 0 : i32
    return %arg0, %c0_i32 : i32, i32
  }
  func.func @transform_4(%arg0: i32) -> (i32, i32, i32) {
    %c0_i32 = arith.constant 0 : i32
    %c0_i32_0 = arith.constant 0 : i32
    %c0_i32_1 = arith.constant 0 : i32
    return %c0_i32, %arg0, %c0_i32_0 : i32, i32, i32
  }
  func.func @transform_5(%arg0: i32) -> (i32, i32) {
    %c0_i32 = arith.constant 0 : i32
    %c0_i32_0 = arith.constant 0 : i32
    return %arg0, %c0_i32 : i32, i32
  }
  func.func @transform_6(%arg0: i32) -> (i32, i32) {
    %c0_i32 = arith.constant 0 : i32
    %c0_i32_0 = arith.constant 0 : i32
    return %arg0, %c0_i32 : i32, i32
  }
}

</mosaic_0001>

<llo_original>
// kernel: tpu_custom_call.1
$region0: #{tpu_custom_call.1}
  #allocation0 [shape = 'u32[]', space=smem, size = 0x4, offset = 0x4, fixed_abs, tag = 'smem constant byte address 0x4 - core index']
  #allocation1 [shape = 'u32[144,128]{1,0:T(1,128)}', space=vmem, size = 0x12000, scoped, tag = 'internal scratch']
  #allocation2 [shape = 'f32[1]{0:T(128)S(6)}', space=smem, size = 0x200, scoped, tag = 'scoped memory for tpu_custom_call.1']
  %s0 = inlined_call_operand.<no memory space> [shape: f32[1], index: 0, kind: input, shape index: {}]
  %s1 = inlined_call_operand.vmem [shape: f32[2,8,128], index: 1, kind: input, shape index: {}]
  %s2 = inlined_call_operand.hbm [shape: f32[8,128], index: 2, kind: input, shape index: {}, may-alias: {2,5}]
  %s3 = inlined_call_operand.hbm [shape: f32[8,128], index: 3, kind: input, shape index: {}, may-alias: {3,6}]
  %s4 = inlined_call_operand.hbm [shape: f32[3,8,128], index: 4, kind: output, shape index: {0}]
  %s5 = inlined_call_operand.hbm [shape: f32[8,128], index: 5, kind: output, shape index: {1}, may-alias: {2,5}]
  %s6 = inlined_call_operand.hbm [shape: f32[8,128], index: 6, kind: output, shape index: {2}, may-alias: {3,6}]
  %7 = xla_tuple %s4, %s5, %s6
  %s8 = sld [smem:[#allocation0]]
  $region50: #{tpu_custom_call.1} parent=0
    _
  %s10 = ssub.s32 1, %s8
  %s11 = scalar_select 0, %s10, %s8
  %12 = sst [smem:[#allocation2]] %s0
  $region1: #{tpu_custom_call.1} parent=0
    #allocation3 [shape = 'u8[4096]{0}', space=vmem, size = 0x1000, scoped, tag = 'input window, operand 2, single buffered']
    #allocation4 [shape = 's32[1]{0}', space=sflag, size = 0x4, scoped, tag = 'scoped memory for tpu_custom_call.1']
    #allocation5 [shape = 's32[1]{0}', space=sflag, size = 0x4, scoped, tag = 'scoped memory for tpu_custom_call.1']
    #allocation6 [shape = 'u8[4096]{0}', space=vmem, size = 0x1000, scoped, tag = 'input window, operand 3, single buffered']
    #allocation7 [shape = 's32[1]{0}', space=sflag, size = 0x4, scoped, tag = 'scoped memory for tpu_custom_call.1']
    #allocation8 [shape = 'u8[12288]{0}', space=vmem, size = 0x3000, scoped, tag = 'output window, operand 0, single buffered']
    #allocation9 [shape = 'u8[4096]{0}', space=vmem, size = 0x1000, scoped, tag = 'output window, operand 1, single buffered']
    #allocation10 [shape = 's32[1]{0}', space=sflag, size = 0x4, scoped, tag = 'scoped memory for tpu_custom_call.1']
    #allocation11 [shape = 'u8[4096]{0}', space=vmem, size = 0x1000, scoped, tag = 'output window, operand 2, single buffered']
    %13 = vsyncpa [#allocation4], 0
    %14 = vsyncpa [#allocation7], 0
    %15 = vsyncpa [#allocation5], 0
    %16 = vsyncpa [#allocation10], 0
    // Predicated region
    $region2: #{tpu_custom_call.1} parent=1 // pred_check
      _
    $region3: #{tpu_custom_call.1} parent=1 // pred_check_branch
      %18 = sbr.rel (0) target = $region5
    $region4: #{tpu_custom_call.1} parent=1 // pred_region
      _
    $region5: #{tpu_custom_call.1} parent=1 // pred_fallthru
      _
    // Predicated region
    $region6: #{tpu_custom_call.1} parent=1 // pred_check
      _
    $region7: #{tpu_custom_call.1} parent=1 // pred_check_branch
      %20 = sbr.rel (0) target = $region9
    $region8: #{tpu_custom_call.1} parent=1 // pred_region
      _
    $region9: #{tpu_custom_call.1} parent=1 // pred_fallthru
      _
    // Predicated region
    $region10: #{tpu_custom_call.1} parent=1 // pred_check
      _
    $region11: #{tpu_custom_call.1} parent=1 // pred_check_branch
      %22 = sbr.rel (0) target = $region13
    $region12: #{tpu_custom_call.1} parent=1 // pred_region
      %s24 = ssub.s32 128, 128
      %25 = vsyncadd [#allocation4], %s24
      %s27 = sshll.u32 [#allocation3], 4
      %s28 = int_to_ptr.vmem [resolvable:$true] %s27
      %30 = dma.hbm_to_vmem [thread:$0]  %s2, 128, %s28, [#allocation4]
    $region13: #{tpu_custom_call.1} parent=1 // pred_fallthru
      _
    // Predicated region
    $region14: #{tpu_custom_call.1} parent=1 // pred_check
      _
    $region15: #{tpu_custom_call.1} parent=1 // pred_check_branch
      %32 = sbr.rel (0) target = $region17
    $region16: #{tpu_custom_call.1} parent=1 // pred_region
      %s34 = ssub.s32 128, 128
      %35 = vsyncadd [#allocation7], %s34
      %s37 = sshll.u32 [#allocation6], 4
      %s38 = int_to_ptr.vmem [resolvable:$true] %s37
      %40 = dma.hbm_to_vmem [thread:$0]  %s3, 128, %s38, [#allocation7]
    $region17: #{tpu_custom_call.1} parent=1 // pred_fallthru
      _
    // Predicated region
    $region18: #{tpu_custom_call.1} parent=1 // pred_check
      _
    $region19: #{tpu_custom_call.1} parent=1 // pred_check_branch
      %42 = sbr.rel (0) target = $region21
    $region20: #{tpu_custom_call.1} parent=1 // pred_region
      %43 = dma.done [#allocation4], 128
    $region21: #{tpu_custom_call.1} parent=1 // pred_fallthru
      _
    // Predicated region
    $region22: #{tpu_custom_call.1} parent=1 // pred_check
      _
    $region23: #{tpu_custom_call.1} parent=1 // pred_check_branch
      %45 = sbr.rel (0) target = $region25
    $region24: #{tpu_custom_call.1} parent=1 // pred_region
      %46 = dma.done [#allocation7], 128
    $region25: #{tpu_custom_call.1} parent=1 // pred_fallthru
      _
    %s47 = sld [smem:[#allocation2]]
    %v48 = vld [vmem:[#allocation3] sm:$0xff]
    %v49 = vld [vmem:[#allocation6] sm:$0xff]
    %v50 = vld [vmem:[%s1] sm:$0xff]
    %s51 = scalar_lea.vmem %s1, 8
    %v52 = vld [vmem:[%s51] sm:$0xff]
    %vm53 = vcmp.ge.f32.partialorder %v48, 0.0
    %v54 = vstv %s47
    %v55 = vadd.f32 %v48, %v54
    %v56 = vsel %vm53, %v55, %v48
    %vm57 = vcmp.ge.f32.partialorder %v49, 0.0
    %v58 = vadd.f32 %v49, %v54
    %v59 = vsel %vm57, %v58, %v49
    %vm60 = vcmp.gt.f32.partialorder %v50, -inf
    %v61 = vsel %vm60, %v50, %v56
    %vm62 = vcmp.gt.f32.partialorder %v52, -inf
    %v63 = vsel %vm62, %v52, %v59
    %v64 = vmul.f32 %v61, -0.05
    %v65 = vmul.f32 %v64, 1.442695
    %v66 = vpow.pop %v65
    %v67 = vmul.f32 %v63, -0.05
    %v68 = vmul.f32 %v67, 1.442695
    %v69 = vpow.pop %v68
    %vm70 = vcmp.ne.f32.partialorder %v66, 0.0
    %vm71 = vcmp.ne.f32.partialorder %v69, 0.0
    %vm72 = vmor %vm70, %vm71
    %v73 = vsel %vm72, 0.0, 1.0
    %vm74 = vcmp.eq.f32.partialorder %v66, 0.0
    %v75 = vsel %vm74, 0.42745098, %v66
    %vm76 = vcmp.eq.f32.partialorder %v69, 0.0
    %v77 = vsel %vm76, 0.41568628, %v69
    %78 = vst [vmem:[#allocation8] sm:$0xff] %v75
    %s79 = scalar_lea.vmem [#allocation8], 8
    %80 = vst [vmem:[%s79] sm:$0xff] %v73
    %s81 = scalar_lea.vmem [#allocation8], 16
    %82 = vst [vmem:[%s81] sm:$0xff] %v77
    %83 = vst [vmem:[#allocation9] sm:$0xff] %v61
    %84 = vst [vmem:[#allocation11] sm:$0xff] %v63
    // Predicated region
    $region26: #{tpu_custom_call.1} parent=1 // pred_check
      _
    $region27: #{tpu_custom_call.1} parent=1 // pred_check_branch
      %86 = sbr.rel (0) target = $region29
    $region28: #{tpu_custom_call.1} parent=1 // pred_region
      %s88 = ssub.s32 384, 384
      %89 = vsyncadd [#allocation5], %s88
      %s90 = sshll.u32 [#allocation8], 4
      %s91 = int_to_ptr.vmem [resolvable:$true] %s90
      %96 = dma.vmem_to_hbm [thread:$0]  %s91, 384, %s4, [#allocation5], 128, 128, 8
    $region29: #{tpu_custom_call.1} parent=1 // pred_fallthru
      _
    // Predicated region
    $region30: #{tpu_custom_call.1} parent=1 // pred_check
      _
    $region31: #{tpu_custom_call.1} parent=1 // pred_check_branch
      %98 = sbr.rel (0) target = $region33
    $region32: #{tpu_custom_call.1} parent=1 // pred_region
      %s100 = ssub.s32 128, 128
      %101 = vsyncadd [#allocation10], %s100
      %s103 = sshll.u32 [#allocation9], 4
      %s104 = int_to_ptr.vmem [resolvable:$true] %s103
      %106 = dma.vmem_to_hbm [thread:$0]  %s104, 128, %s5, [#allocation10]
    $region33: #{tpu_custom_call.1} parent=1 // pred_fallthru
      _
    // Predicated region
    $region34: #{tpu_custom_call.1} parent=1 // pred_check
      _
    $region35: #{tpu_custom_call.1} parent=1 // pred_check_branch
      %108 = sbr.rel (0) target = $region37
    $region36: #{tpu_custom_call.1} parent=1 // pred_region
      %s110 = ssub.s32 128, 128
      %111 = vsyncadd [#allocation10], %s110
      %s113 = sshll.u32 [#allocation11], 4
      %s114 = int_to_ptr.vmem [resolvable:$true] %s113
      %116 = dma.vmem_to_hbm [thread:$0]  %s114, 128, %s6, [#allocation10]
    $region37: #{tpu_custom_call.1} parent=1 // pred_fallthru
      _
    // Predicated region
    $region38: #{tpu_custom_call.1} parent=1 // pred_check
      _
    $region39: #{tpu_custom_call.1} parent=1 // pred_check_branch
      %118 = sbr.rel (0) target = $region41
    $region40: #{tpu_custom_call.1} parent=1 // pred_region
      %119 = dma.done [#allocation5], 384
    $region41: #{tpu_custom_call.1} parent=1 // pred_fallthru
      _
    // Predicated region
    $region42: #{tpu_custom_call.1} parent=1 // pred_check
      _
    $region43: #{tpu_custom_call.1} parent=1 // pred_check_branch
      %121 = sbr.rel (0) target = $region45
    $region44: #{tpu_custom_call.1} parent=1 // pred_region
      %122 = dma.done [#allocation10], 128
    $region45: #{tpu_custom_call.1} parent=1 // pred_fallthru
      _
    // Predicated region
    $region46: #{tpu_custom_call.1} parent=1 // pred_check
      _
    $region47: #{tpu_custom_call.1} parent=1 // pred_check_branch
      %124 = sbr.rel (0) target = $region49
    $region48: #{tpu_custom_call.1} parent=1 // pred_region
      %125 = dma.done [#allocation10], 128
    $region49: #{tpu_custom_call.1} parent=1 // pred_fallthru
      _
    %126 = vsyncpa [#allocation4], 1
    %127 = vsyncpa [#allocation7], 1
    %128 = vsyncpa [#allocation5], 1
    %129 = vsyncpa [#allocation10], 1

</llo_original>
